<compile_context>
chip_gen: v7x
topology: tpu7x:2x2x1
jax: 0.10.0
libtpu: 0.0.40
codegen_flags: <defaults>
</compile_context>

<pallas_src>
import functools
import math

import jax
import jax.numpy as jnp
from jax import lax
from jax.experimental import pallas as pl
from jax.experimental.pallas import tpu as pltpu


def _round_up(x, m):
    return ((x + m - 1) // m) * m


def _gcn_kernel(text_ref, adj_ref, w_ref, b_ref, out_ref, hidden_ref,
                *, fout, fout_pad, use_ones_col, chunk):
    """One (batch b, node-row tile i) grid step.

    text_ref   : (N_colpad, Fin)        whole (padded) feature slab for batch b
    adj_ref    : (TN, N_colpad)         row tile of the adjacency for batch b
    w_ref      : (Fin, Fout_pad)        shared weight
    b_ref      : (1, Fout_pad)          shared bias
    out_ref    : (TN, Fout_pad)         output row tile
    hidden_ref : (N_colpad, Fout_pad)   VMEM scratch holding text @ W for batch b
    """
    n_colpad = text_ref.shape[0]

    # ---- per batch (first row tile): hidden = text @ W, chunked over rows ---------
    # Chunking bounds the live f32 matmul intermediate to (chunk, Fout_pad) and lets
    # the pipeline overlap it with the first adj-tile DMAs.  When a padded output
    # lane is available (use_ones_col) we also plant a column of ones so the big
    # adj @ hidden matmul produces the row-degree for free.
    @pl.when(pl.program_id(1) == 0)
    def _():
        w = w_ref[...]
        num_chunks = n_colpad // chunk
        if use_ones_col:
            ones_mask = lax.broadcasted_iota(jnp.int32, (chunk, fout_pad), 1) == fout
        else:
            ones_mask = None

        def body(c, carry):
            start = pl.multiple_of(c * chunk, chunk)
            t = text_ref[pl.ds(start, chunk), :]
            h = jnp.dot(t, w, preferred_element_type=jnp.float32)
            if use_ones_col:
                h = jnp.where(ones_mask, 1.0, h)
            hidden_ref[pl.ds(start, chunk), :] = h.astype(hidden_ref.dtype)
            return carry

        lax.fori_loop(0, num_chunks, body, 0, unroll=num_chunks <= 8)

    # ---- per row tile: neighbour aggregation on the MXU ---------------------------
    adj = adj_ref[...]  # native dtype straight into the MXU
    agg = jnp.dot(adj, hidden_ref[...], preferred_element_type=jnp.float32)

    if use_ones_col:
        # Padded adj columns are zero, so agg[:, fout] == sum_j adj[i, j].
        denom = agg[:, fout:fout + 1] + 1.0                      # (TN, 1), f32
    else:
        # Fallback (Fout is an exact multiple of 128): explicit row reduction.
        denom = jnp.sum(adj.astype(jnp.float32), axis=-1, keepdims=True) + 1.0

    # denom = row_sum + 1 >= 1 for non-negative adjacency, so the approximate EUP
    # reciprocal is well conditioned (documented precision trade vs exact divide).
    inv_denom = pl.reciprocal(denom, approx=True)
    out = agg * inv_denom + b_ref[...].astype(jnp.float32)
    out_ref[...] = jnp.maximum(out, 0.0).astype(out_ref.dtype)


def graph_convolution(text, adj, weight, bias):
    """text: (B, N, Fin), adj: (B, N, N), weight: (Fin, Fout), bias: (Fout,)."""
    B, N, Fin = text.shape
    Fout = weight.shape[1]

    LANE = 128
    sub = 16 if text.dtype == jnp.bfloat16 else 8
    itemsize = jnp.dtype(text.dtype).itemsize

    Fout_pad = _round_up(Fout, LANE)          # lane-dense output stores
    use_ones_col = Fout_pad > Fout            # spare padded lane -> MXU denominator

    # Contraction/column padding only needs lane density (128), independent of TN.
    N_colpad = _round_up(N, LANE)

    # hidden = text @ W chunk size (rows per sub-matmul); must divide N_colpad.
    CH = min(512, N_colpad)
    while N_colpad % CH:
        CH //= 2

    # --- hardware-aware VMEM budget -------------------------------------------------
    try:
        vmem_cap = int(pltpu.get_tpu_info().vmem_capacity_bytes)
    except Exception:  # not on TPU / API unavailable: assume v7x's 64 MiB per TC
        vmem_cap = 64 * 1024 * 1024
    VMEM_BUDGET = int(vmem_cap * 0.75)        # ~96 MiB on 128 MiB parts, ~48 MiB on v7x

    def vmem_estimate(tn, adj_bufs):
        adj_buf = adj_bufs * tn * N_colpad * itemsize       # pipelined adj row tile
        out_buf = 2 * tn * Fout_pad * itemsize              # double-buffered output
        text_buf = 2 * N_colpad * Fin * itemsize            # per-batch text slab
        w_buf = 2 * Fin * Fout_pad * jnp.dtype(weight.dtype).itemsize
        b_buf = 2 * Fout_pad * jnp.dtype(bias.dtype).itemsize
        hidden_buf = N_colpad * Fout_pad * itemsize         # persistent scratch
        f32_tmp = (CH + tn) * Fout_pad * 4                  # live f32 matmul results
        return adj_buf + out_buf + text_buf + w_buf + b_buf + hidden_buf + f32_tmp

    ADJ_BUFS = 3       # deeper adj pipeline rides through the per-batch text@W bubble
    TN = 512
    while TN > sub and vmem_estimate(TN, ADJ_BUFS) > VMEM_BUDGET:
        TN //= 2
    TN = max(TN, sub)
    TN = min(TN, _round_up(N, sub))           # don't over-tile tiny graphs
    N_rowpad = _round_up(N, TN)
    row_tiles = N_rowpad // TN
    use_deep_adj = row_tiles >= 3             # extra buffer pointless for <3 tiles
    adj_bufs = ADJ_BUFS if use_deep_adj else 2

    est = vmem_estimate(TN, adj_bufs)
    vmem_limit = int(min(int(vmem_cap * 0.85),            # headroom for compiler scratch
                         max(32 * 1024 * 1024, 2 * est)))

    # --- zero-pad operands (exact: padded rows/cols contribute nothing) -------------
    text_p = text if N_colpad == N else jnp.pad(text, ((0, 0), (0, N_colpad - N), (0, 0)))
    adj_p = adj
    if N_rowpad != N or N_colpad != N:
        adj_p = jnp.pad(adj, ((0, 0), (0, N_rowpad - N), (0, N_colpad - N)))
    adj_p = adj_p.astype(text.dtype)          # keep both MXU operands in one dtype
    w_p = weight if Fout_pad == Fout else jnp.pad(weight, ((0, 0), (0, Fout_pad - Fout)))
    b_p = bias if Fout_pad == Fout else jnp.pad(bias, (0, Fout_pad - Fout))
    b_p = b_p.reshape(1, Fout_pad)

    if use_deep_adj:
        adj_spec = pl.BlockSpec((None, TN, N_colpad), lambda b, i: (b, i, 0),
                                pipeline_mode=pl.Buffered(adj_bufs))
    else:
        adj_spec = pl.BlockSpec((None, TN, N_colpad), lambda b, i: (b, i, 0))

    kernel = functools.partial(
        _gcn_kernel,
        fout=Fout, fout_pad=Fout_pad, use_ones_col=use_ones_col, chunk=CH)

    out_p = pl.pallas_call(
        kernel,
        out_shape=jax.ShapeDtypeStruct((B, N_rowpad, Fout_pad), text.dtype),
        grid_spec=pltpu.PrefetchScalarGridSpec(
            num_scalar_prefetch=0,
            grid=(B, row_tiles),
            in_specs=[
                pl.BlockSpec((None, N_colpad, Fin), lambda b, i: (b, 0, 0)),  # text[b]
                adj_spec,                                                      # adj row tile
                pl.BlockSpec((Fin, Fout_pad), lambda b, i: (0, 0)),            # weight
                pl.BlockSpec((1, Fout_pad), lambda b, i: (0, 0)),              # bias
            ],
            out_specs=pl.BlockSpec((None, TN, Fout_pad), lambda b, i: (b, i, 0)),
            scratch_shapes=[pltpu.VMEM((N_colpad, Fout_pad), text.dtype)],     # hidden
        ),
        compiler_params=pltpu.CompilerParams(
            # Batch axis can shard across TensorCores; the node-row axis stays
            # "arbitrary" because row tiles of a batch reuse the hidden scratch.
            dimension_semantics=("parallel", "arbitrary"),
            vmem_limit_bytes=vmem_limit,
        ),
    )(text_p, adj_p, w_p, b_p)

    return out_p[:, :N, :Fout]


def init_params(key, in_features, out_features):
    """Deterministic parameter init mirroring the PyTorch reset_parameters()."""
    k_w, k_b = jax.random.split(key)
    # kaiming_uniform_(a=sqrt(5)) with fan_in=in_features => bound = 1/sqrt(fan_in)
    w_bound = 1.0 / math.sqrt(in_features)
    weight = jax.random.uniform(
        k_w, (in_features, out_features), jnp.float32, -w_bound, w_bound
    )
    b_bound = 1.0 / math.sqrt(in_features)
    bias = jax.random.uniform(
        k_b, (out_features,), jnp.float32, -b_bound, b_bound
    )
    return weight, bias


def _reference(text, adj, weight, bias):
    hidden = jnp.einsum("bnf,fo->bno", text, weight)
    denom = jnp.sum(adj, axis=2, keepdims=True) + 1.0
    return jnp.maximum(jnp.einsum("bnm,bmo->bno", adj, hidden) / denom + bias, 0.0)


if __name__ == "__main__":
    key = jax.random.PRNGKey(0)

    # Case 1: small shapes, Fout_pad > Fout -> ones-column (MXU) denominator path.
    B, N, Fin, Fout = 2, 8, 16, 32
    k_text, k_adj, k_param, key = jax.random.split(key, 4)
    text = jax.random.normal(k_text, (B, N, Fin), jnp.float32)
    adj = jax.random.uniform(k_adj, (B, N, N), jnp.float32)   # non-negative adjacency
    weight, bias = init_params(k_param, Fin, Fout)

    out = jax.block_until_ready(graph_convolution(text, adj, weight, bias))
    ref = _reference(text, adj, weight, bias)
    assert out.shape == ref.shape
    # Tolerance accounts for the in-kernel EUP approximate reciprocal.
    assert jnp.allclose(out, ref, atol=5e-3, rtol=5e-3), "mismatch vs reference (case 1)"

    # Case 2: Fout % 128 == 0 -> explicit-sum fallback path; decoupled row/col padding.
    B2, N2, Fin2, Fout2 = 2, 200, 16, 128
    k_text2, k_adj2, k_param2, key = jax.random.split(key, 4)
    text2 = jax.random.normal(k_text2, (B2, N2, Fin2), jnp.float32)
    adj2 = jax.random.uniform(k_adj2, (B2, N2, N2), jnp.float32)
    weight2, bias2 = init_params(k_param2, Fin2, Fout2)

    out2 = jax.block_until_ready(graph_convolution(text2, adj2, weight2, bias2))
    ref2 = _reference(text2, adj2, weight2, bias2)
    assert out2.shape == ref2.shape
    assert jnp.allclose(out2, ref2, atol=5e-3, rtol=5e-3), "mismatch vs reference (case 2)"

    print("KERNEL_OK")
</pallas_src>

<mosaic_0001>
module attributes {stable_mosaic.version = 11 : i64} {
  func.func @_gcn_kernel(%arg0: i32, %arg1: i32, %arg2: memref<1x128x16xf32, #tpu.memory_space<vmem>>, %arg3: memref<1x8x128xf32, #tpu.memory_space<vmem>>, %arg4: memref<16x128xf32, #tpu.memory_space<vmem>>, %arg5: memref<1x128xf32, #tpu.memory_space<vmem>>, %arg6: memref<1x8x128xf32, #tpu.memory_space<vmem>>, %arg7: memref<128x128xf32, #tpu.memory_space<vmem>>) attributes {dimension_semantics = [#tpu.dimension_semantics<parallel>, #tpu.dimension_semantics<arbitrary>], iteration_bounds = array<i64: 2, 1>, scalar_prefetch = 0 : i64, scratch_operands = 1 : i64, tpu.core_type = #tpu.core_type<tc>, window_params = [{transform_indices = @transform_0, window_bounds = array<i64: 1, 128, 16>}, {transform_indices = @transform_1, window_bounds = array<i64: 1, 8, 128>}, {pipeline_mode = #tpu.pipeline_mode<synchronous>, transform_indices = @transform_2, window_bounds = array<i64: 16, 128>}, {pipeline_mode = #tpu.pipeline_mode<synchronous>, transform_indices = @transform_3, window_bounds = array<i64: 1, 128>}, {transform_indices = @transform_4, window_bounds = array<i64: 1, 8, 128>}]} {
    %c0_i32 = arith.constant 0 : i32
    %0 = arith.cmpi eq, %arg1, %c0_i32 : i32
    %1 = arith.extui %0 : i1 to i32
    %c0_i32_0 = arith.constant 0 : i32
    %2 = arith.cmpi ne, %1, %c0_i32_0 : i32
    scf.if %2 {
      %c0_12 = arith.constant 0 : index
      %c0_13 = arith.constant 0 : index
      %21 = vector.load %arg4[%c0_12, %c0_13] : memref<16x128xf32, #tpu.memory_space<vmem>>, vector<16x128xf32>
      %22 = tpu.iota {dimensions = array<i32: 1>} : vector<128x128xi32>
      %c32_i32 = arith.constant 32 : i32
      %23 = vector.broadcast %c32_i32 : i32 to vector<128x128xi32>
      %24 = arith.cmpi eq, %22, %23 : vector<128x128xi32>
      %c0_i32_14 = arith.constant 0 : i32
      %c128_i32 = arith.constant 128 : i32
      %25 = arith.muli %c0_i32_14, %c128_i32 : i32
      %26 = tpu.assume_multiple %25, 128 : i32
      %c0_15 = arith.constant 0 : index
      %27 = arith.index_cast %26 : i32 to index
      %c0_16 = arith.constant 0 : index
      %28 = vector.load %arg2[%c0_15, %27, %c0_16] : memref<1x128x16xf32, #tpu.memory_space<vmem>>, vector<1x128x16xf32>
      %29 = vector.shape_cast %28 : vector<1x128x16xf32> to vector<128x16xf32>
      %cst_17 = arith.constant dense<0.000000e+00> : vector<128x128xf32>
      %30 = tpu.matmul %29, %21, %cst_17 {dimension_numbers = #tpu.dot_dimension_numbers<[1], [0], [0], [1], [0, 0, 1, 1], [], []>} : vector<128x16xf32>, vector<16x128xf32>, vector<128x128xf32> -> vector<128x128xf32>
      %cst_18 = arith.constant 1.000000e+00 : f32
      %31 = vector.broadcast %cst_18 : f32 to vector<128x128xf32>
      %32 = arith.select %24, %31, %30 : vector<128x128xi1>, vector<128x128xf32>
      %33 = arith.index_cast %26 : i32 to index
      %c0_19 = arith.constant 0 : index
      %34 = vector.load %arg7[%33, %c0_19] : memref<128x128xf32, #tpu.memory_space<vmem>>, vector<128x128xf32>
      tpu.vector_store %arg7[%33, %c0_19], %32 {strides = array<i32>} : memref<128x128xf32, #tpu.memory_space<vmem>>, vector<128x128xf32>,
      %c1_i32 = arith.constant 1 : i32
    } else {
    }
    %c0 = arith.constant 0 : index
    %c0_1 = arith.constant 0 : index
    %c0_2 = arith.constant 0 : index
    %3 = vector.load %arg3[%c0, %c0_1, %c0_2] : memref<1x8x128xf32, #tpu.memory_space<vmem>>, vector<1x8x128xf32>
    %4 = vector.shape_cast %3 : vector<1x8x128xf32> to vector<8x128xf32>
    %c0_3 = arith.constant 0 : index
    %c0_4 = arith.constant 0 : index
    %5 = vector.load %arg7[%c0_3, %c0_4] : memref<128x128xf32, #tpu.memory_space<vmem>>, vector<128x128xf32>
    %cst = arith.constant dense<0.000000e+00> : vector<8x128xf32>
    %6 = tpu.matmul %4, %5, %cst {dimension_numbers = #tpu.dot_dimension_numbers<[1], [0], [0], [1], [0, 0, 1, 1], [], []>} : vector<8x128xf32>, vector<128x128xf32>, vector<8x128xf32> -> vector<8x128xf32>
    %7 = vector.extract_strided_slice %6 {offsets = [0, 32], sizes = [8, 1], strides = [1, 1]} : vector<8x128xf32> to vector<8x1xf32>
    %cst_5 = arith.constant 1.000000e+00 : f32
    %8 = vector.broadcast %cst_5 : f32 to vector<8x1xf32>
    %9 = arith.addf %7, %8 : vector<8x1xf32>
    %10 = tpu.reciprocal %9 {approx = true} : vector<8x1xf32> -> vector<8x1xf32>
    %11 = vector.broadcast %10 : vector<8x1xf32> to vector<8x128xf32>
    %12 = arith.mulf %6, %11 : vector<8x128xf32>
    %c0_6 = arith.constant 0 : index
    %c0_7 = arith.constant 0 : index
    %13 = vector.load %arg5[%c0_6, %c0_7] : memref<1x128xf32, #tpu.memory_space<vmem>>, vector<1x128xf32>
    %14 = vector.broadcast %13 : vector<1x128xf32> to vector<8x128xf32>
    %15 = arith.addf %12, %14 : vector<8x128xf32>
    %cst_8 = arith.constant 0.000000e+00 : f32
    %16 = vector.broadcast %cst_8 : f32 to vector<8x128xf32>
    %17 = arith.maximumf %15, %16 : vector<8x128xf32>
    %c0_9 = arith.constant 0 : index
    %c0_10 = arith.constant 0 : index
    %c0_11 = arith.constant 0 : index
    %18 = vector.load %arg6[%c0_9, %c0_10, %c0_11] : memref<1x8x128xf32, #tpu.memory_space<vmem>>, vector<1x8x128xf32>
    %19 = vector.shape_cast %18 : vector<1x8x128xf32> to vector<8x128xf32>
    %20 = vector.shape_cast %17 : vector<8x128xf32> to vector<1x8x128xf32>
    tpu.vector_store %arg6[%c0_9, %c0_10, %c0_11], %20 {strides = array<i32>} : memref<1x8x128xf32, #tpu.memory_space<vmem>>, vector<1x8x128xf32>,
    return
  }
  func.func @transform_0(%arg0: i32, %arg1: i32) -> (i32, i32, i32) {
    %c0_i32 = arith.constant 0 : i32
    %c0_i32_0 = arith.constant 0 : i32
    %c0_i32_1 = arith.constant 0 : i32
    return %arg0, %c0_i32, %c0_i32_0 : i32, i32, i32
  }
  func.func @transform_1(%arg0: i32, %arg1: i32) -> (i32, i32, i32) {
    %c0_i32 = arith.constant 0 : i32
    %c0_i32_0 = arith.constant 0 : i32
    return %arg0, %arg1, %c0_i32 : i32, i32, i32
  }
  func.func @transform_2(%arg0: i32, %arg1: i32) -> (i32, i32) {
    %c0_i32 = arith.constant 0 : i32
    %c0_i32_0 = arith.constant 0 : i32
    %c0_i32_1 = arith.constant 0 : i32
    return %c0_i32, %c0_i32_0 : i32, i32
  }
  func.func @transform_3(%arg0: i32, %arg1: i32) -> (i32, i32) {
    %c0_i32 = arith.constant 0 : i32
    %c0_i32_0 = arith.constant 0 : i32
    %c0_i32_1 = arith.constant 0 : i32
    return %c0_i32, %c0_i32_0 : i32, i32
  }
  func.func @transform_4(%arg0: i32, %arg1: i32) -> (i32, i32, i32) {
    %c0_i32 = arith.constant 0 : i32
    %c0_i32_0 = arith.constant 0 : i32
    return %arg0, %arg1, %c0_i32 : i32, i32, i32
  }
}

</mosaic_0001>

<llo_original>
// kernel: tpu_custom_call.1
$region0: #{tpu_custom_call.1}
  #allocation0 [shape = 'u32[]', space=smem, size = 0x4, offset = 0x4, fixed_abs, tag = 'smem constant byte address 0x4 - core index']
  #allocation1 [shape = 'u32[144,128]{1,0:T(1,128)}', space=vmem, size = 0x12000, scoped, tag = 'internal scratch']
  #allocation2 [shape = 'f32[128,128]{1,0:T(8,128)}', space=vmem, size = 0x10000, scoped, tag = 'scratch operand']
  %s0 = inlined_call_operand.vmem [shape: f32[2,128,16], index: 0, kind: input, shape index: {}]
  %s1 = inlined_call_operand.vmem [shape: f32[2,8,128], index: 1, kind: input, shape index: {}]
  %s2 = inlined_call_operand.vmem [shape: f32[16,128], index: 2, kind: input, shape index: {}]
  %s3 = inlined_call_operand.vmem [shape: f32[1,128], index: 3, kind: input, shape index: {}]
  %s4 = inlined_call_operand.hbm [shape: f32[2,8,128], index: 4, kind: output, shape index: {}]
  %s5 = sld [smem:[#allocation0]]
  $region53: #{tpu_custom_call.1} parent=0
    _
  %s7 = ssub.s32 1, %s5
  %s8 = scalar_select 0, %s7, %s5
  $region1: #{tpu_custom_call.1} parent=0
    #allocation3 [shape = 'u8[8192]{0}', space=vmem, size = 0x2000, scoped, tag = 'output window, operand 0']
    #allocation4 [shape = 's32[2]{0}', space=sflag, size = 0x8, scoped, tag = 'scoped memory for tpu_custom_call.1']
    %9 = vsyncpa [#allocation4], 0
    %s10 = scalar_lea.sflag [#allocation4], 1
    %11 = vsyncpa %s10, 0
    loop: start=0, step=1, limit=4
    $region2: #{tpu_custom_call.1} parent=1 // loop_pre_header
      _
    $region3: #{tpu_custom_call.1} parent=1 // loop_header
      %s13 = sphi 0, %s17
      %p14 = scmp.ge.s32.totalorder %s13, 4
      %s20 = sphi 0, %s32
      %s21 = sphi 0, %s28
      %s22 = sphi 0, %s20
      %s23 = sphi 0, %s21
      %s24 = sphi 0, %s22
      %s25 = sphi 0, %s23
      %s35 = sphi 0, %s37
      %s38 = sphi 0, %s35
      %s39 = sphi 0, %s38
      %s55 = sphi 0, %s39
      %s63 = sphi 0, %s65
      %s66 = sphi 0, %s63
      %s67 = sphi 0, %s66
      %s83 = sphi 0, %s67
      %s87 = sphi 0, %s87
      %s89 = sphi 0, %s87
      %s90 = sphi 0, %s89
      %s104 = sphi 0, %s90
      %s108 = sphi 0, %s108
      %s110 = sphi 0, %s108
      %s111 = sphi 0, %s110
      %s125 = sphi 0, %s111
      %s133 = sphi 0, %s135
      %s136 = sphi 0, %s133
      %s137 = sphi 0, %s136
      %s153 = sphi 0, %s137
    $region4: #{tpu_custom_call.1} parent=1 // loop_header_branch
      %16 = sbr.rel (%p14) target = $region8
    $region5: #{tpu_custom_call.1} parent=1 // loop_body
      %s18 = ssub.s32 %s13, 1
      %s19 = ssub.s32 %s13, 2
      %s26 = sadd.s32 1, %s21
      %p27 = scmp.ge.s32.totalorder %s26, 1
      %s28 = scalar_select %p27, 0, %s26
      %s29 = sadd.s32 1, %s20
      %s30 = scalar_select %p27, %s29, %s20
      %p31 = scmp.ge.s32.totalorder %s30, 2
      %s32 = scalar_select %p31, 0, %s30
      %s33 = ssub.s32 %s20, %s32
      %p34 = scmp.eq.s32.totalorder %s33, 0
      %s36 = sadd.s32 %s35, 1
      %s37 = scalar_select %p34, %s35, %s36
      %p40 = pneg %p34
      %p41 = scmp.eq.s32.totalorder %s13, 1
      %p42 = por %p40, %p41
      %p43 = scmp.ne.s32.totalorder %s35, %s38
      %p44 = scmp.eq.s32.totalorder %s13, 0
      %p45 = por %p43, %p44
      %p46 = scmp.ne.s32.totalorder %s35, %s38
      %p47 = scmp.eq.s32.totalorder %s18, 1
      %p48 = por %p46, %p47
      %p49 = scmp.ne.s32.totalorder %s38, %s39
      %p50 = scmp.eq.s32.totalorder %s18, 0
      %p51 = por %p49, %p50
      %p52 = scmp.ne.s32.totalorder %s38, %s39
      %p53 = scmp.eq.s32.totalorder %s19, 1
      %p54 = por %p52, %p53
      %p56 = scmp.ne.s32.totalorder %s39, %s55
      %p57 = scmp.eq.s32.totalorder %s19, 0
      %p58 = por %p56, %p57
      %s59 = ssub.s32 %s20, %s32
      %s60 = ssub.s32 %s21, %s28
      %s61 = sor.u32 %s59, %s60
      %p62 = scmp.eq.s32.totalorder %s61, 0
      %s64 = sadd.s32 %s63, 1
      %s65 = scalar_select %p62, %s63, %s64
      %p68 = pneg %p62
      %p69 = scmp.eq.s32.totalorder %s13, 1
      %p70 = por %p68, %p69
      %p71 = scmp.ne.s32.totalorder %s63, %s66
      %p72 = scmp.eq.s32.totalorder %s13, 0
      %p73 = por %p71, %p72
      %p74 = scmp.ne.s32.totalorder %s63, %s66
      %p75 = scmp.eq.s32.totalorder %s18, 1
      %p76 = por %p74, %p75
      %p77 = scmp.ne.s32.totalorder %s66, %s67
      %p78 = scmp.eq.s32.totalorder %s18, 0
      %p79 = por %p77, %p78
      %p80 = scmp.ne.s32.totalorder %s66, %s67
      %p81 = scmp.eq.s32.totalorder %s19, 1
      %p82 = por %p80, %p81
      %p84 = scmp.ne.s32.totalorder %s67, %s83
      %p85 = scmp.eq.s32.totalorder %s19, 0
      %p86 = por %p84, %p85
      %s88 = sadd.s32 %s87, 1
      %p91 = scmp.eq.s32.totalorder %s13, 1
      %p92 = scmp.ne.s32.totalorder %s87, %s89
      %p93 = scmp.eq.s32.totalorder %s13, 0
      %p94 = por %p92, %p93
      %p95 = scmp.ne.s32.totalorder %s87, %s89
      %p96 = scmp.eq.s32.totalorder %s18, 1
      %p97 = por %p95, %p96
      %p98 = scmp.ne.s32.totalorder %s89, %s90
      %p99 = scmp.eq.s32.totalorder %s18, 0
      %p100 = por %p98, %p99
      %p101 = scmp.ne.s32.totalorder %s89, %s90
      %p102 = scmp.eq.s32.totalorder %s19, 1
      %p103 = por %p101, %p102
      %p105 = scmp.ne.s32.totalorder %s90, %s104
      %p106 = scmp.eq.s32.totalorder %s19, 0
      %p107 = por %p105, %p106
      %s109 = sadd.s32 %s108, 1
      %p112 = scmp.eq.s32.totalorder %s13, 1
      %p113 = scmp.ne.s32.totalorder %s108, %s110
      %p114 = scmp.eq.s32.totalorder %s13, 0
      %p115 = por %p113, %p114
      %p116 = scmp.ne.s32.totalorder %s108, %s110
      %p117 = scmp.eq.s32.totalorder %s18, 1
      %p118 = por %p116, %p117
      %p119 = scmp.ne.s32.totalorder %s110, %s111
      %p120 = scmp.eq.s32.totalorder %s18, 0
      %p121 = por %p119, %p120
      %p122 = scmp.ne.s32.totalorder %s110, %s111
      %p123 = scmp.eq.s32.totalorder %s19, 1
      %p124 = por %p122, %p123
      %p126 = scmp.ne.s32.totalorder %s111, %s125
      %p127 = scmp.eq.s32.totalorder %s19, 0
      %p128 = por %p126, %p127
      %s129 = ssub.s32 %s20, %s32
      %s130 = ssub.s32 %s21, %s28
      %s131 = sor.u32 %s129, %s130
      %p132 = scmp.eq.s32.totalorder %s131, 0
      %s134 = sadd.s32 %s133, 1
      %s135 = scalar_select %p132, %s133, %s134
      %p138 = pneg %p132
      %p139 = scmp.eq.s32.totalorder %s13, 1
      %p140 = por %p138, %p139
      %p141 = scmp.ne.s32.totalorder %s133, %s136
      %p142 = scmp.eq.s32.totalorder %s13, 0
      %p143 = por %p141, %p142
      %p144 = scmp.ne.s32.totalorder %s133, %s136
      %p145 = scmp.eq.s32.totalorder %s18, 1
      %p146 = por %p144, %p145
      %p147 = scmp.ne.s32.totalorder %s136, %s137
      %p148 = scmp.eq.s32.totalorder %s18, 0
      %p149 = por %p147, %p148
      %p150 = scmp.ne.s32.totalorder %s136, %s137
      %p151 = scmp.eq.s32.totalorder %s19, 1
      %p152 = por %p150, %p151
      %p154 = scmp.ne.s32.totalorder %s137, %s153
      %p155 = scmp.eq.s32.totalorder %s19, 0
      %p156 = por %p154, %p155
      %p157 = scmp.le.s32.totalorder 1, %s13
      %p158 = scmp.lt.s32.totalorder %s13, 3
      %p159 = pnand %p157, %p158
      %p160 = pneg %p159
      // Predicated region
      $region9: #{tpu_custom_call.1} parent=5 // pred_check
        _
      $region10: #{tpu_custom_call.1} parent=5 // pred_check_branch
        %162 = sbr.rel (%p159) target = $region12
      $region11: #{tpu_custom_call.1} parent=5 // pred_region
        %s163 = ssub.s32 %s13, 1
        // Predicated region
        $region13: #{tpu_custom_call.1} parent=11 // pred_check
          %p164 = pneg %p100
        $region14: #{tpu_custom_call.1} parent=11 // pred_check_branch
          %166 = sbr.rel (%p164) target = $region16
        $region15: #{tpu_custom_call.1} parent=11 // pred_region
          _
        $region16: #{tpu_custom_call.1} parent=11 // pred_fallthru
          _
        // Predicated region
        $region17: #{tpu_custom_call.1} parent=11 // pred_check
          %p167 = pneg %p121
        $region18: #{tpu_custom_call.1} parent=11 // pred_check_branch
          %169 = sbr.rel (%p167) target = $region20
        $region19: #{tpu_custom_call.1} parent=11 // pred_region
          _
        $region20: #{tpu_custom_call.1} parent=11 // pred_fallthru
          _
      $region12: #{tpu_custom_call.1} parent=5 // pred_fallthru
        _
      %p170 = scmp.lt.s32.totalorder %s13, 2
      // Predicated region
      $region21: #{tpu_custom_call.1} parent=5 // pred_check
        %p171 = pneg %p170
      $region22: #{tpu_custom_call.1} parent=5 // pred_check_branch
        %173 = sbr.rel (%p171) target = $region24
      $region23: #{tpu_custom_call.1} parent=5 // pred_region
        // Predicated region
        $region25: #{tpu_custom_call.1} parent=23 // pred_check
          %p174 = pneg %p45
        $region26: #{tpu_custom_call.1} parent=23 // pred_check_branch
          %176 = sbr.rel (%p174) target = $region28
        $region27: #{tpu_custom_call.1} parent=23 // pred_region
          %p177 = scmp.lt.s32.totalorder %s20, 1
          %s178 = scalar_select %p177, %s20, 1
          %s179 = smul.addr %s178, 16
          %s180 = smul.addr %s179, 8
          %s181 = scalar_lea.vmem %s0, %s180
        $region28: #{tpu_custom_call.1} parent=23 // pred_fallthru
          _
        // Predicated region
        $region29: #{tpu_custom_call.1} parent=23 // pred_check
          %p182 = pneg %p73
        $region30: #{tpu_custom_call.1} parent=23 // pred_check_branch
          %184 = sbr.rel (%p182) target = $region32
        $region31: #{tpu_custom_call.1} parent=23 // pred_region
          %p185 = scmp.lt.s32.totalorder %s20, 1
          %s186 = scalar_select %p185, %s20, 1
          %p187 = scmp.lt.s32.totalorder %s21, 0
          %s188 = scalar_select %p187, %s21, 0
          %s189 = sadd.s32 %s188, %s186
          %s190 = smul.addr %s189, 8
          %s191 = scalar_lea.vmem %s1, %s190
        $region32: #{tpu_custom_call.1} parent=23 // pred_fallthru
          _
      $region24: #{tpu_custom_call.1} parent=5 // pred_fallthru
        _
      %p192 = scmp.le.s32.totalorder 1, %s13
      %p193 = scmp.lt.s32.totalorder %s13, 3
      %p194 = pnand %p192, %p193
      %p195 = pneg %p194
      // Predicated region
      $region33: #{tpu_custom_call.1} parent=5 // pred_check
        _
      $region34: #{tpu_custom_call.1} parent=5 // pred_check_branch
        %197 = sbr.rel (%p194) target = $region36
      $region35: #{tpu_custom_call.1} parent=5 // pred_region
        %s198 = ssub.s32 %s13, 1
        %p199 = scmp.lt.s32.totalorder %s22, 1
        %s200 = scalar_select %p199, %s22, 1
        %s201 = smul.addr %s200, 16
        %s202 = smul.addr %s201, 8
        %s203 = scalar_lea.vmem %s0, %s202
        %p204 = pneg %p51
        %p205 = pneg %p48
        %p206 = scmp.lt.s32.totalorder %s22, 1
        %s207 = scalar_select %p206, %s22, 1
        %p208 = scmp.lt.s32.totalorder %s23, 0
        %s209 = scalar_select %p208, %s23, 0
        %s210 = sadd.s32 %s209, %s207
        %s211 = smul.addr %s210, 8
        %s212 = scalar_lea.vmem %s1, %s211
        %p213 = pneg %p79
        %p214 = pneg %p76
        %p215 = pneg %p100
        %p216 = pneg %p97
        %p217 = pneg %p121
        %p218 = pneg %p118
        %p219 = pneg %p149
        %p220 = pneg %p146
        %s221 = sand.u32 %s136, 1
        %s222 = scalar_lea.sflag [#allocation4], %s221
        %s223 = sand.u32 %s136, 1
        %s224 = smul.addr %s223, 8
        %s225 = scalar_lea.vmem [#allocation3], %s224
        %p226 = scmp.lt.s32.totalorder %s22, 1
        %s227 = scalar_select %p226, %s22, 1
        %s228 = smul.addr %s227, 16
        %s229 = smul.addr %s228, 8
        %s230 = scalar_lea.vmem %s0, %s229
        %p231 = scmp.lt.s32.totalorder %s22, 1
        %s232 = scalar_select %p231, %s22, 1
        %p233 = scmp.lt.s32.totalorder %s23, 0
        %s234 = scalar_select %p233, %s23, 0
        %s235 = sadd.s32 %s234, %s232
        %s236 = smul.addr %s235, 8
        %s237 = scalar_lea.vmem %s1, %s236
        %p238 = scmp.eq.s32.totalorder %s23, 0
        // Predicated region
        $region37: #{tpu_custom_call.1} parent=35 // pred_check
          %p239 = pneg %p238
        $region38: #{tpu_custom_call.1} parent=35 // pred_check_branch
          %241 = sbr.rel (%p239) target = $region40
        $region39: #{tpu_custom_call.1} parent=35 // pred_region
          %v242 = vld [vmem:[%s2] sm:$0xff]
          %v243 = vld [vmem:[%s2 + $0x8] sm:$0xff]
          %v244 = vlaneseq
          %v245 = vand.u32 %v244, 127
          %vm246 = vcmp.eq.s32.totalorder %v245, 32
          %v247 = vld [vmem:[%s230] sm:$0xff]
          %v248 = vld [vmem:[%s230 + $0x8] sm:$0xff]
          %v249 = vld [vmem:[%s230 + $0x10] sm:$0xff]
          %v250 = vld [vmem:[%s230 + $0x18] sm:$0xff]
          %v251 = vld [vmem:[%s230 + $0x20] sm:$0xff]
          %v252 = vld [vmem:[%s230 + $0x28] sm:$0xff]
          %v253 = vld [vmem:[%s230 + $0x30] sm:$0xff]
          %v254 = vld [vmem:[%s230 + $0x38] sm:$0xff]
          %v255 = vld [vmem:[%s230 + $0x40] sm:$0xff]
          %v256 = vld [vmem:[%s230 + $0x48] sm:$0xff]
          %v257 = vld [vmem:[%s230 + $0x50] sm:$0xff]
          %v258 = vld [vmem:[%s230 + $0x58] sm:$0xff]
          %v259 = vld [vmem:[%s230 + $0x60] sm:$0xff]
          %v260 = vld [vmem:[%s230 + $0x68] sm:$0xff]
          %v261 = vld [vmem:[%s230 + $0x70] sm:$0xff]
          %v262 = vld [vmem:[%s230 + $0x78] sm:$0xff]
          %vm263 = vcmask 130048
          %v265 = vsel %vm263, %v247, 0
          %v268 = vsel %vm263, %v248, 0
          %v271 = vsel %vm263, %v249, 0
          %v274 = vsel %vm263, %v250, 0
          %v277 = vsel %vm263, %v251, 0
          %v280 = vsel %vm263, %v252, 0
          %v283 = vsel %vm263, %v253, 0
          %v286 = vsel %vm263, %v254, 0
          %v289 = vsel %vm263, %v255, 0
          %v292 = vsel %vm263, %v256, 0
          %v295 = vsel %vm263, %v257, 0
          %v298 = vsel %vm263, %v258, 0
          %v301 = vsel %vm263, %v259, 0
          %v304 = vsel %vm263, %v260, 0
          %v307 = vsel %vm263, %v261, 0
          %v310 = vsel %vm263, %v262, 0
          %312 = vmatprep.subr.mxu0 0.0
          %313 = vmatpush1.msra.mxu0 %v242
          %314 = vmatprep.subr.mxu0 0.0
          %315 = vmatpush1.msra.mxu0 %v243
          %316 = vmatprep.subr.mxu0 0.0
          %317 = vmatpush1.msra.mxu0 0.0
          %318 = vmatprep.subr.mxu0 0.0
          %319 = vmatpush1.msra.mxu0 0.0
          %320 = vmatprep.subr.mxu0 0.0
          %321 = vmatpush1.msra.mxu0 0.0
          %322 = vmatprep.subr.mxu0 0.0
          %323 = vmatpush1.msra.mxu0 0.0
          %324 = vmatprep.subr.mxu0 0.0
          %325 = vmatpush1.msra.mxu0 0.0
          %326 = vmatprep.subr.mxu0 0.0
          %327 = vmatpush1.msra.mxu0 0.0
          %328 = vmatprep.subr.mxu0 0.0
          %329 = vmatpush1.msra.mxu0 0.0
          %330 = vmatprep.subr.mxu0 0.0
          %331 = vmatpush1.msra.mxu0 0.0
          %332 = vmatprep.subr.mxu0 0.0
          %333 = vmatpush1.msra.mxu0 0.0
          %334 = vmatprep.subr.mxu0 0.0
          %335 = vmatpush1.msra.mxu0 0.0
          %336 = vmatprep.subr.mxu0 0.0
          %337 = vmatpush1.msra.mxu0 0.0
          %338 = vmatprep.subr.mxu0 0.0
          %339 = vmatpush1.msra.mxu0 0.0
          %340 = vmatprep.subr.mxu0 0.0
          %341 = vmatpush1.msra.mxu0 0.0
          %342 = vmatprep.subr.mxu0 0.0
          %343 = vmatpush1.msra.mxu0 0.0
          %344 = vmatprep.subr.mxu0 0.0
          %345 = vmatpush1.msra.mxu0 0.0
          %346 = vmatprep.subr.mxu0 0.0
          %347 = vmatpush1.msra.mxu0 0.0
          %348 = vmatprep.subr.mxu0 0.0
          %349 = vmatpush1.msra.mxu0 0.0
          %350 = vmatprep.subr.mxu0 0.0
          %351 = vmatpush1.msra.mxu0 0.0
          %352 = vmatprep.subr.mxu0 0.0
          %353 = vmatpush1.msra.mxu0 0.0
          %354 = vmatprep.subr.mxu0 0.0
          %355 = vmatpush1.msra.mxu0 0.0
          %356 = vmatprep.subr.mxu0 0.0
          %357 = vmatpush1.msra.mxu0 0.0
          %358 = vmatprep.subr.mxu0 0.0
          %359 = vmatpush1.msra.mxu0 0.0
          %360 = vmatprep.subr.mxu0 0.0
          %361 = vmatpush1.msra.mxu0 0.0
          %362 = vmatprep.subr.mxu0 0.0
          %363 = vmatpush1.msra.mxu0 0.0
          %364 = vmatprep.subr.mxu0 0.0
          %365 = vmatpush1.msra.mxu0 0.0
          %366 = vmatprep.subr.mxu0 0.0
          %367 = vmatpush1.msra.mxu0 0.0
          %368 = vmatprep.subr.mxu0 0.0
          %369 = vmatpush1.msra.mxu0 0.0
          %370 = vmatprep.subr.mxu0 0.0
          %371 = vmatpush1.msra.mxu0 0.0
          %372 = vmatprep.subr.mxu0 0.0
          %373 = vmatpush1.msra.mxu0 0.0
          %374 = vmatprep.subr.mxu0 0.0
          %375 = vmatpush1.msra.mxu0 0.0
          %376 = vmatprep.mubr.f32.mxu0 0.0
          %377 = vmatmul.mubr.f32.gmra.mrb[0].mxu0 %v265
          %v378 = vpop.f32.mrb[0].mxu0
          %v379 = vadd.f32 0.0, %v378
          %v380 = vpop.f32.mrb[0].mxu0
          %381 = vmatprep.mubr.f32.mxu0 0.0
          %382 = vmatmul.mubr.f32.gmra.mrb[0].mxu0 %v268
          %v383 = vpop.f32.mrb[0].mxu0
          %v384 = vadd.f32 0.0, %v383
          %v385 = vpop.f32.mrb[0].mxu0
          %386 = vmatprep.mubr.f32.mxu0 0.0
          %387 = vmatmul.mubr.f32.gmra.mrb[0].mxu0 %v271
          %v388 = vpop.f32.mrb[0].mxu0
          %v389 = vadd.f32 0.0, %v388
          %v390 = vpop.f32.mrb[0].mxu0
          %391 = vmatprep.mubr.f32.mxu0 0.0
          %392 = vmatmul.mubr.f32.gmra.mrb[0].mxu0 %v274
          %v393 = vpop.f32.mrb[0].mxu0
          %v394 = vadd.f32 0.0, %v393
          %v395 = vpop.f32.mrb[0].mxu0
          %396 = vmatprep.mubr.f32.mxu0 0.0
          %397 = vmatmul.mubr.f32.gmra.mrb[0].mxu0 %v277
          %v398 = vpop.f32.mrb[0].mxu0
          %v399 = vadd.f32 0.0, %v398
          %v400 = vpop.f32.mrb[0].mxu0
          %401 = vmatprep.mubr.f32.mxu0 0.0
          %402 = vmatmul.mubr.f32.gmra.mrb[0].mxu0 %v280
          %v403 = vpop.f32.mrb[0].mxu0
          %v404 = vadd.f32 0.0, %v403
          %v405 = vpop.f32.mrb[0].mxu0
          %406 = vmatprep.mubr.f32.mxu0 0.0
          %407 = vmatmul.mubr.f32.gmra.mrb[0].mxu0 %v283
          %v408 = vpop.f32.mrb[0].mxu0
          %v409 = vadd.f32 0.0, %v408
          %v410 = vpop.f32.mrb[0].mxu0
          %411 = vmatprep.mubr.f32.mxu0 0.0
          %412 = vmatmul.mubr.f32.gmra.mrb[0].mxu0 %v286
          %v413 = vpop.f32.mrb[0].mxu0
          %v414 = vadd.f32 0.0, %v413
          %v415 = vpop.f32.mrb[0].mxu0
          %416 = vmatprep.mubr.f32.mxu0 0.0
          %417 = vmatmul.mubr.f32.gmra.mrb[0].mxu0 %v289
          %v418 = vpop.f32.mrb[0].mxu0
          %v419 = vadd.f32 0.0, %v418
          %v420 = vpop.f32.mrb[0].mxu0
          %421 = vmatprep.mubr.f32.mxu0 0.0
          %422 = vmatmul.mubr.f32.gmra.mrb[0].mxu0 %v292
          %v423 = vpop.f32.mrb[0].mxu0
          %v424 = vadd.f32 0.0, %v423
          %v425 = vpop.f32.mrb[0].mxu0
          %426 = vmatprep.mubr.f32.mxu0 0.0
          %427 = vmatmul.mubr.f32.gmra.mrb[0].mxu0 %v295
          %v428 = vpop.f32.mrb[0].mxu0
          %v429 = vadd.f32 0.0, %v428
          %v430 = vpop.f32.mrb[0].mxu0
          %431 = vmatprep.mubr.f32.mxu0 0.0
          %432 = vmatmul.mubr.f32.gmra.mrb[0].mxu0 %v298
          %v433 = vpop.f32.mrb[0].mxu0
          %v434 = vadd.f32 0.0, %v433
          %v435 = vpop.f32.mrb[0].mxu0
          %436 = vmatprep.mubr.f32.mxu0 0.0
          %437 = vmatmul.mubr.f32.gmra.mrb[0].mxu0 %v301
          %v438 = vpop.f32.mrb[0].mxu0
          %v439 = vadd.f32 0.0, %v438
          %v440 = vpop.f32.mrb[0].mxu0
          %441 = vmatprep.mubr.f32.mxu0 0.0
          %442 = vmatmul.mubr.f32.gmra.mrb[0].mxu0 %v304
          %v443 = vpop.f32.mrb[0].mxu0
          %v444 = vadd.f32 0.0, %v443
          %v445 = vpop.f32.mrb[0].mxu0
          %446 = vmatprep.mubr.f32.mxu0 0.0
          %447 = vmatmul.mubr.f32.gmra.mrb[0].mxu0 %v307
          %v448 = vpop.f32.mrb[0].mxu0
          %v449 = vadd.f32 0.0, %v448
          %v450 = vpop.f32.mrb[0].mxu0
          %451 = vmatprep.mubr.f32.mxu0 0.0
          %452 = vmatmul.mubr.f32.gmra.mrb[0].mxu0 %v310
          %v453 = vpop.f32.mrb[0].mxu0
          %v454 = vadd.f32 0.0, %v453
          %v455 = vpop.f32.mrb[0].mxu0
          %456 = vdwg.mxu0
          %v457 = vsel %vm246, 1.0, %v379
          %v458 = vsel %vm246, 1.0, %v384
          %v459 = vsel %vm246, 1.0, %v389
          %v460 = vsel %vm246, 1.0, %v394
          %v461 = vsel %vm246, 1.0, %v399
          %v462 = vsel %vm246, 1.0, %v404
          %v463 = vsel %vm246, 1.0, %v409
          %v464 = vsel %vm246, 1.0, %v414
          %v465 = vsel %vm246, 1.0, %v419
          %v466 = vsel %vm246, 1.0, %v424
          %v467 = vsel %vm246, 1.0, %v429
          %v468 = vsel %vm246, 1.0, %v434
          %v469 = vsel %vm246, 1.0, %v439
          %v470 = vsel %vm246, 1.0, %v444
          %v471 = vsel %vm246, 1.0, %v449
          %v472 = vsel %vm246, 1.0, %v454
          %473 = vst [vmem:[#allocation2] sm:$0xff] %v457
          %474 = vst [vmem:[#allocation2 + $0x8] sm:$0xff] %v458
          %475 = vst [vmem:[#allocation2 + $0x10] sm:$0xff] %v459
          %476 = vst [vmem:[#allocation2 + $0x18] sm:$0xff] %v460
          %477 = vst [vmem:[#allocation2 + $0x20] sm:$0xff] %v461
          %478 = vst [vmem:[#allocation2 + $0x28] sm:$0xff] %v462
          %479 = vst [vmem:[#allocation2 + $0x30] sm:$0xff] %v463
          %480 = vst [vmem:[#allocation2 + $0x38] sm:$0xff] %v464
          %481 = vst [vmem:[#allocation2 + $0x40] sm:$0xff] %v465
          %482 = vst [vmem:[#allocation2 + $0x48] sm:$0xff] %v466
          %483 = vst [vmem:[#allocation2 + $0x50] sm:$0xff] %v467
          %484 = vst [vmem:[#allocation2 + $0x58] sm:$0xff] %v468
          %485 = vst [vmem:[#allocation2 + $0x60] sm:$0xff] %v469
          %486 = vst [vmem:[#allocation2 + $0x68] sm:$0xff] %v470
          %487 = vst [vmem:[#allocation2 + $0x70] sm:$0xff] %v471
          %488 = vst [vmem:[#allocation2 + $0x78] sm:$0xff] %v472
        $region40: #{tpu_custom_call.1} parent=35 // pred_fallthru
          _
        %v489 = vld [vmem:[%s237] sm:$0xff]
        %v490 = vld [vmem:[#allocation2] sm:$0xff]
        %v491 = vld [vmem:[#allocation2 + $0x8] sm:$0xff]
        %v492 = vld [vmem:[#allocation2 + $0x10] sm:$0xff]
        %v493 = vld [vmem:[#allocation2 + $0x18] sm:$0xff]
        %v494 = vld [vmem:[#allocation2 + $0x20] sm:$0xff]
        %v495 = vld [vmem:[#allocation2 + $0x28] sm:$0xff]
        %v496 = vld [vmem:[#allocation2 + $0x30] sm:$0xff]
        %v497 = vld [vmem:[#allocation2 + $0x38] sm:$0xff]
        %v498 = vld [vmem:[#allocation2 + $0x40] sm:$0xff]
        %v499 = vld [vmem:[#allocation2 + $0x48] sm:$0xff]
        %v500 = vld [vmem:[#allocation2 + $0x50] sm:$0xff]
        %v501 = vld [vmem:[#allocation2 + $0x58] sm:$0xff]
        %v502 = vld [vmem:[#allocation2 + $0x60] sm:$0xff]
        %v503 = vld [vmem:[#allocation2 + $0x68] sm:$0xff]
        %v504 = vld [vmem:[#allocation2 + $0x70] sm:$0xff]
        %v505 = vld [vmem:[#allocation2 + $0x78] sm:$0xff]
        %506 = vmatprep.subr.mxu0 0.0
        %507 = vmatpush1.msra.mxu0 %v490
        %508 = vmatprep.subr.mxu0 0.0
        %509 = vmatpush1.msra.mxu0 %v491
        %510 = vmatprep.subr.mxu0 0.0
        %511 = vmatpush1.msra.mxu0 %v492
        %512 = vmatprep.subr.mxu0 0.0
        %513 = vmatpush1.msra.mxu0 %v493
        %514 = vmatprep.subr.mxu0 0.0
        %515 = vmatpush1.msra.mxu0 %v494
        %516 = vmatprep.subr.mxu0 0.0
        %517 = vmatpush1.msra.mxu0 %v495
        %518 = vmatprep.subr.mxu0 0.0
        %519 = vmatpush1.msra.mxu0 %v496
        %520 = vmatprep.subr.mxu0 0.0
        %521 = vmatpush1.msra.mxu0 %v497
        %522 = vmatprep.subr.mxu0 0.0
        %523 = vmatpush1.msra.mxu0 %v498
        %524 = vmatprep.subr.mxu0 0.0
        %525 = vmatpush1.msra.mxu0 %v499
        %526 = vmatprep.subr.mxu0 0.0
        %527 = vmatpush1.msra.mxu0 %v500
        %528 = vmatprep.subr.mxu0 0.0
        %529 = vmatpush1.msra.mxu0 %v501
        %530 = vmatprep.subr.mxu0 0.0
        %531 = vmatpush1.msra.mxu0 %v502
        %532 = vmatprep.subr.mxu0 0.0
        %533 = vmatpush1.msra.mxu0 %v503
        %534 = vmatprep.subr.mxu0 0.0
        %535 = vmatpush1.msra.mxu0 %v504
        %536 = vmatprep.subr.mxu0 0.0
        %537 = vmatpush1.msra.mxu0 %v505
        %538 = vmatprep.subr.mxu0 0.0
        %539 = vmatpush1.msra.mxu0 0.0
        %540 = vmatprep.subr.mxu0 0.0
        %541 = vmatpush1.msra.mxu0 0.0
        %542 = vmatprep.subr.mxu0 0.0
        %543 = vmatpush1.msra.mxu0 0.0
        %544 = vmatprep.subr.mxu0 0.0
        %545 = vmatpush1.msra.mxu0 0.0
        %546 = vmatprep.subr.mxu0 0.0
        %547 = vmatpush1.msra.mxu0 0.0
        %548 = vmatprep.subr.mxu0 0.0
        %549 = vmatpush1.msra.mxu0 0.0
        %550 = vmatprep.subr.mxu0 0.0
        %551 = vmatpush1.msra.mxu0 0.0
        %552 = vmatprep.subr.mxu0 0.0
        %553 = vmatpush1.msra.mxu0 0.0
        %554 = vmatprep.subr.mxu0 0.0
        %555 = vmatpush1.msra.mxu0 0.0
        %556 = vmatprep.subr.mxu0 0.0
        %557 = vmatpush1.msra.mxu0 0.0
        %558 = vmatprep.subr.mxu0 0.0
        %559 = vmatpush1.msra.mxu0 0.0
        %560 = vmatprep.subr.mxu0 0.0
        %561 = vmatpush1.msra.mxu0 0.0
        %562 = vmatprep.subr.mxu0 0.0
        %563 = vmatpush1.msra.mxu0 0.0
        %564 = vmatprep.subr.mxu0 0.0
        %565 = vmatpush1.msra.mxu0 0.0
        %566 = vmatprep.subr.mxu0 0.0
        %567 = vmatpush1.msra.mxu0 0.0
        %568 = vmatprep.subr.mxu0 0.0
        %569 = vmatpush1.msra.mxu0 0.0
        %570 = vmatprep.mubr.f32.mxu0 0.0
        %571 = vmatmul.mubr.f32.gmra.mrb[0].mxu0 %v489
        %v572 = vpop.f32.mrb[0].mxu0
        %v573 = vadd.f32 0.0, %v572
        %v574 = vpop.f32.mrb[0].mxu0
        %575 = vdwg.mxu0
        %v576 = vadd.f32 %v573, 1.0
        %v577 = vrcp.pop %v576
        %579 = vset.pattern.permute.xlu0 32
        %580 = vperm.xlu0 %579, %v577
        %v581 = vpop.permute.xlu0 %580
        %v583 = vmul.f32 %v573, %v581
        %v584 = vld [vmem:[%s3] sm:$0x1]
        %v586 = vlaneseq
        %v587 = vshrl.u32 %v586, 7
        %v588 = vsub.s32 0, %v587
        %v589 = vrot.slane %v584, %v588
        %v591 = vadd.f32 %v583, %v589
        %v592 = vmax.f32 %v591, 0.0
        %593 = vst [vmem:[%s225] sm:$0xff] %v592
        %s594 = sand.u32 %s136, 1
        %s595 = scalar_lea.sflag [#allocation4], %s594
        %s596 = sand.u32 %s136, 1
        %s597 = smul.addr %s596, 8
        %s598 = scalar_lea.vmem [#allocation3], %s597
        // Predicated region
        $region41: #{tpu_custom_call.1} parent=35 // pred_check
          %p599 = pneg %p146
        $region42: #{tpu_custom_call.1} parent=35 // pred_check_branch
          %601 = sbr.rel (%p599) target = $region44
        $region43: #{tpu_custom_call.1} parent=35 // pred_region
          %s603 = ssub.s32 128, 128
          %604 = vsyncadd %s595, %s603
          %s605 = sadd.s32 %s23, %s22
          %s606 = smul.addr %s605, 128
          %s607 = scalar_lea.hbm %s4, %s606
          %s609 = sshll.u32 %s598, 4
          %s610 = int_to_ptr.vmem [resolvable:$true] %s609
          %612 = dma.vmem_to_hbm [thread:$0]  %s610, 128, %s607, %s595
        $region44: #{tpu_custom_call.1} parent=35 // pred_fallthru
          _
      $region36: #{tpu_custom_call.1} parent=5 // pred_fallthru
        _
      %p613 = scmp.le.s32.totalorder 2, %s13
      // Predicated region
      $region45: #{tpu_custom_call.1} parent=5 // pred_check
        %p614 = pneg %p613
      $region46: #{tpu_custom_call.1} parent=5 // pred_check_branch
        %616 = sbr.rel (%p614) target = $region48
      $region47: #{tpu_custom_call.1} parent=5 // pred_region
        %s617 = ssub.s32 %s13, 2
        // Predicated region
        $region49: #{tpu_custom_call.1} parent=47 // pred_check
          %p618 = pneg %p152
        $region50: #{tpu_custom_call.1} parent=47 // pred_check_branch
          %620 = sbr.rel (%p618) target = $region52
        $region51: #{tpu_custom_call.1} parent=47 // pred_region
          %s621 = sand.u32 %s137, 1
          %s622 = scalar_lea.sflag [#allocation4], %s621
          %s623 = sand.u32 %s137, 1
          %s624 = smul.addr %s623, 8
          %s625 = scalar_lea.vmem [#allocation3], %s624
          %626 = dma.done %s622, 128
        $region52: #{tpu_custom_call.1} parent=47 // pred_fallthru
          _
      $region48: #{tpu_custom_call.1} parent=5 // pred_fallthru
        _
    $region6: #{tpu_custom_call.1} parent=1 // loop_footer
      %s17 = sadd.s32 1, %s13
    $region7: #{tpu_custom_call.1} parent=1 // loop_footer_branch
      %12 = sbr.rel target = $region3
    $region8: #{tpu_custom_call.1} parent=1 // loop_exit
      _
    %627 = vsyncpa [#allocation4], 1
    %s628 = scalar_lea.sflag [#allocation4], 1
    %629 = vsyncpa %s628, 1

</llo_original>
